<compile_context>
chip_gen: v5e
topology: v5e:2x2
jax: 0.10.0
libtpu: 0.0.40
codegen_flags: <defaults>
</compile_context>

<pallas_src>
import functools

import jax
import jax.numpy as jnp
from jax import lax
from jax.experimental import pallas as pl
from jax.experimental.pallas import tpu as pltpu


def _round_up(n, m):
    return ((n + m - 1) // m) * m


def _pick_seq_chunk(seq, bytes_per_step, target_bytes=4 << 20):
    """Largest divisor of `seq` whose streamed chunk tile stays under budget."""
    max_chunk = max(1, target_bytes // max(bytes_per_step, 1))
    c = min(seq, max_chunk)
    while seq % c:
        c -= 1
    return c


def rnn_chunk_kernel(xw_ref, h0_ref, whh_t_ref, wcls_t_ref, bcls_ref,
                     logits_ref, hout_ref,
                     h_scr, acc_scr, *, seq_total):
    """One (batch-block, seq-chunk) grid step of the tanh RNN.

    Shapes (padded by the wrapper):
      xw_ref:     (chunk, Bb, Hp) bf16  gathered projected inputs, bias folded in
      h0_ref:     (Bb, Hp)        f32   initial hidden state block
      whh_t_ref:  (Hp, Hp)        bf16  W_hh^T
      wcls_t_ref: (Hp, Vp)        bf16  W_cls^T
      bcls_ref:   (1, Vp)         f32   classifier bias
      logits_ref: (Bb, Vp)        f32   written on the last seq chunk
      hout_ref:   (Bb, Hp)        f32   written on the last seq chunk
      h_scr/acc_scr: (Bb, Hp) f32 scratch carried across seq chunks
    """
    s = pl.program_id(1)
    ns = pl.num_programs(1)
    chunk = xw_ref.shape[0]

    @pl.when(s == 0)
    def _():
        h_scr[...] = h0_ref[...]
        acc_scr[...] = jnp.zeros_like(acc_scr)

    def step(t, carry):
        h_prev, acc = carry
        x_t = xw_ref[t].astype(jnp.float32)                       # (Bb, Hp)
        # Re-read W_hh^T from VMEM each step (vld slots have slack) rather than
        # keeping a (Hp, Hp) live value across the unrolled body (avoids spills
        # on the serial critical path when Hp is large).
        pre = x_t + jnp.dot(h_prev.astype(whh_t_ref.dtype), whh_t_ref[...],
                            preferred_element_type=jnp.float32)
        h_new = jnp.tanh(pre)
        return h_new, acc + h_new

    h_final, acc = lax.fori_loop(
        0, chunk, step, (h_scr[...], acc_scr[...]),
        unroll=True if chunk <= 16 else 4)

    h_scr[...] = h_final
    acc_scr[...] = acc

    @pl.when(s == ns - 1)
    def _():
        # Mean over time, then classifier: one lane-dense MXU matmul.
        # TODO(synk): for very large vocab, split the classifier into its own
        # pallas_call tiled over Vp instead of keeping W_cls^T VMEM-resident.
        y_mean = acc * (1.0 / float(seq_total))
        logits_ref[...] = (
            jnp.dot(y_mean.astype(wcls_t_ref.dtype), wcls_t_ref[...],
                    preferred_element_type=jnp.float32)
            + bcls_ref[...])
        hout_ref[...] = h_final


def rnn_model_forward(params, x_ids, state):
    """Pallas equivalent of RNNModel.forward(x, state) (single-layer tanh RNN)."""
    emb = params["embedding"]
    vocab, _dim = emb.shape
    hidden = params["w_hh"].shape[0]
    h0 = state[0]                                            # (batch, hidden)
    batch = h0.shape[0]
    seq = x_ids.shape[1]

    # Padded sizes: batch -> sublane multiple, feature dims -> lane multiples.
    bp = _round_up(batch, 8)
    hp = _round_up(hidden, 128)
    vp = _round_up(vocab, 128)

    # (1) Projected embedding table: ONE small f32 matmul over vocab rows
    #     (vocab << seq*batch) replaces the per-token input projection.
    table = (emb.astype(jnp.float32) @ params["w_ih"].T.astype(jnp.float32)
             + (params["b_ih"] + params["b_hh"]).astype(jnp.float32))

    # (2) Gather projected rows time-major (permute fused into the gather),
    #     stream as bf16; pad batch->sublane, hidden->lane multiples. Padded
    #     rows carry zero input (bias lives in the table, not broadcast), so
    #     padded batch rows keep h == 0 through the recurrence.
    # TODO(synk): for very large seq*batch, move this gather in-kernel
    #     (scalar-prefetched ids + per-row DMA from the HBM-resident table).
    xw = table[x_ids.T].astype(jnp.bfloat16)                 # (seq, batch, hidden)
    xw = jnp.pad(xw, ((0, 0), (0, bp - batch), (0, hp - hidden)))

    h0_p = jnp.pad(h0.astype(jnp.float32),
                   ((0, bp - batch), (0, hp - hidden)))
    whh_t = jnp.pad(params["w_hh"].T,
                    ((0, hp - hidden), (0, hp - hidden))).astype(jnp.bfloat16)
    wcls_t = jnp.pad(params["w_cls"].T,
                     ((0, hp - hidden), (0, vp - vocab))).astype(jnp.bfloat16)
    bcls = jnp.pad(params["b_cls"].reshape(1, vocab).astype(jnp.float32),
                   ((0, 0), (0, vp - vocab)))

    # Batch blocking: split the padded batch across the 2 TensorCores on v7x
    # when the halves stay sublane-aligned; single block otherwise (v5e/v6e).
    bb = bp // 2 if (bp >= 16 and (bp // 2) % 8 == 0) else bp
    nb = bp // bb

    # Seq-chunk size from a VMEM byte budget (double-buffered bf16 tile).
    chunk = _pick_seq_chunk(seq, bytes_per_step=bb * hp * 2)
    ns = seq // chunk

    # Explicit VMEM budget: v5e's default scoped limit is only 16 MiB and v7x
    # has 64 MiB physical — size the request, clamp to a safe ceiling.
    vmem_need = (2 * chunk * bb * hp * 2            # double-buffered xw chunk
                 + bb * hp * 4                      # h0 block
                 + hp * hp * 2 + hp * vp * 2        # W_hh^T, W_cls^T (bf16)
                 + vp * 4                           # b_cls
                 + 2 * (bb * vp * 4 + bb * hp * 4)  # outputs
                 + 2 * bb * hp * 4)                 # h / acc scratch
    vmem_limit = int(min(max(2 * vmem_need, 32 << 20), 48 << 20))

    kernel = functools.partial(rnn_chunk_kernel, seq_total=seq)

    logits_p, h_final_p = pl.pallas_call(
        kernel,
        out_shape=(jax.ShapeDtypeStruct((bp, vp), jnp.float32),
                   jax.ShapeDtypeStruct((bp, hp), jnp.float32)),
        grid=(nb, ns),
        in_specs=[
            pl.BlockSpec((chunk, bb, hp), lambda b, s: (s, b, 0)),   # xw chunk
            pl.BlockSpec((bb, hp), lambda b, s: (b, 0)),             # h0
            pl.BlockSpec((hp, hp), lambda b, s: (0, 0)),             # W_hh^T
            pl.BlockSpec((hp, vp), lambda b, s: (0, 0)),             # W_cls^T
            pl.BlockSpec((1, vp), lambda b, s: (0, 0)),              # b_cls
        ],
        out_specs=(
            pl.BlockSpec((bb, vp), lambda b, s: (b, 0)),             # logits
            pl.BlockSpec((bb, hp), lambda b, s: (b, 0)),             # h_final
        ),
        scratch_shapes=[pltpu.VMEM((bb, hp), jnp.float32),           # h carry
                        pltpu.VMEM((bb, hp), jnp.float32)],          # time-sum
        compiler_params=pltpu.CompilerParams(
            dimension_semantics=("parallel", "arbitrary"),
            vmem_limit_bytes=vmem_limit),
    )(xw, h0_p, whh_t, wcls_t, bcls)

    logits = logits_p[:batch, :vocab]
    h_final = h_final_p[:batch, :hidden]
    return logits, h_final[None]                             # state: (1, B, H)


def reference_forward(params, x_ids, state):
    """Pure-JAX f32 reference matching torch semantics (for verification)."""
    emb = params["embedding"][x_ids]
    x = jnp.transpose(emb, (1, 0, 2))
    h = state[0]
    ys = []
    for t in range(x.shape[0]):
        h = jnp.tanh(x[t] @ params["w_ih"].T + params["b_ih"]
                     + h @ params["w_hh"].T + params["b_hh"])
        ys.append(h)
    y = jnp.stack(ys, axis=0)
    logits = y.mean(axis=0) @ params["w_cls"].T + params["b_cls"]
    return logits, h[None]


if __name__ == "__main__":
    # Small shapes consistent with the module's forward.
    batch, seq = 2, 8
    vocab_size, vector_dim, hidden = 16, 32, 32

    key = jax.random.PRNGKey(0)
    k_emb, k_wih, k_whh, k_bih, k_bhh, k_wc, k_bc, k_x = jax.random.split(key, 8)

    params = {
        "embedding": 0.1 * jax.random.normal(k_emb, (vocab_size, vector_dim), jnp.float32),
        # nn.RNN(vector_dim, hidden) parameters
        "w_ih": 0.1 * jax.random.normal(k_wih, (hidden, vector_dim), jnp.float32),
        "w_hh": 0.1 * jax.random.normal(k_whh, (hidden, hidden), jnp.float32),
        "b_ih": 0.1 * jax.random.normal(k_bih, (hidden,), jnp.float32),
        "b_hh": 0.1 * jax.random.normal(k_bhh, (hidden,), jnp.float32),
        # nn.Linear(hidden, vocab_size) parameters
        "w_cls": 0.1 * jax.random.normal(k_wc, (vocab_size, hidden), jnp.float32),
        "b_cls": 0.1 * jax.random.normal(k_bc, (vocab_size,), jnp.float32),
    }

    x_ids = jax.random.randint(k_x, (batch, seq), 0, vocab_size, jnp.int32)
    # begin_state(): zeros of shape (num_directions * num_layers, batch, hidden)
    state = jnp.zeros((1, batch, hidden), jnp.float32)

    logits, new_state = rnn_model_forward(params, x_ids, state)
    logits = jax.block_until_ready(logits)
    new_state = jax.block_until_ready(new_state)

    ref_logits, ref_state = reference_forward(params, x_ids, state)

    assert logits.shape == (batch, vocab_size)
    assert new_state.shape == (1, batch, hidden)
    # Tolerance relaxed slightly vs pure-f32 since MXU operands are bf16.
    assert jnp.allclose(logits, ref_logits, atol=5e-3, rtol=5e-3)
    assert jnp.allclose(new_state, ref_state, atol=5e-3, rtol=5e-3)

    print("KERNEL_OK")
</pallas_src>

<mosaic_0001>
module attributes {stable_mosaic.version = 11 : i64} {
  func.func @rnn_chunk_kernel(%arg0: i32, %arg1: i32, %arg2: memref<8x8x128xbf16, #tpu.memory_space<vmem>>, %arg3: memref<8x128xf32, #tpu.memory_space<vmem>>, %arg4: memref<128x128xbf16, #tpu.memory_space<vmem>>, %arg5: memref<128x128xbf16, #tpu.memory_space<vmem>>, %arg6: memref<1x128xf32, #tpu.memory_space<vmem>>, %arg7: memref<8x128xf32, #tpu.memory_space<vmem>>, %arg8: memref<8x128xf32, #tpu.memory_space<vmem>>, %arg9: memref<8x128xf32, #tpu.memory_space<vmem>>, %arg10: memref<8x128xf32, #tpu.memory_space<vmem>>) attributes {dimension_semantics = [#tpu.dimension_semantics<parallel>, #tpu.dimension_semantics<arbitrary>], iteration_bounds = array<i64: 1, 1>, scalar_prefetch = 0 : i64, scratch_operands = 2 : i64, tpu.core_type = #tpu.core_type<tc>, window_params = [{transform_indices = @transform_0, window_bounds = array<i64: 8, 8, 128>}, {transform_indices = @transform_1, window_bounds = array<i64: 8, 128>}, {pipeline_mode = #tpu.pipeline_mode<synchronous>, transform_indices = @transform_2, window_bounds = array<i64: 128, 128>}, {pipeline_mode = #tpu.pipeline_mode<synchronous>, transform_indices = @transform_3, window_bounds = array<i64: 128, 128>}, {pipeline_mode = #tpu.pipeline_mode<synchronous>, transform_indices = @transform_4, window_bounds = array<i64: 1, 128>}, {transform_indices = @transform_5, window_bounds = array<i64: 8, 128>}, {transform_indices = @transform_6, window_bounds = array<i64: 8, 128>}]} {
    %c0_i32 = arith.constant 0 : i32
    %0 = arith.cmpi eq, %arg1, %c0_i32 : i32
    %1 = arith.extui %0 : i1 to i32
    %c0_i32_0 = arith.constant 0 : i32
    %2 = arith.cmpi ne, %1, %c0_i32_0 : i32
    scf.if %2 {
      %c0_50 = arith.constant 0 : index
      %c0_51 = arith.constant 0 : index
      %90 = vector.load %arg3[%c0_50, %c0_51] : memref<8x128xf32, #tpu.memory_space<vmem>>, vector<8x128xf32>
      %c0_52 = arith.constant 0 : index
      %c0_53 = arith.constant 0 : index
      %91 = vector.load %arg9[%c0_52, %c0_53] : memref<8x128xf32, #tpu.memory_space<vmem>>, vector<8x128xf32>
      tpu.vector_store %arg9[%c0_52, %c0_53], %90 {strides = array<i32>} : memref<8x128xf32, #tpu.memory_space<vmem>>, vector<8x128xf32>,
      %cst_54 = arith.constant 0.000000e+00 : f32
      %92 = vector.broadcast %cst_54 : f32 to vector<8x128xf32>
      %c0_55 = arith.constant 0 : index
      %c0_56 = arith.constant 0 : index
      %93 = vector.load %arg10[%c0_55, %c0_56] : memref<8x128xf32, #tpu.memory_space<vmem>>, vector<8x128xf32>
      tpu.vector_store %arg10[%c0_55, %c0_56], %92 {strides = array<i32>} : memref<8x128xf32, #tpu.memory_space<vmem>>, vector<8x128xf32>,
    } else {
    }
    %c0 = arith.constant 0 : index
    %c0_1 = arith.constant 0 : index
    %3 = vector.load %arg9[%c0, %c0_1] : memref<8x128xf32, #tpu.memory_space<vmem>>, vector<8x128xf32>
    %c0_2 = arith.constant 0 : index
    %c0_3 = arith.constant 0 : index
    %4 = vector.load %arg10[%c0_2, %c0_3] : memref<8x128xf32, #tpu.memory_space<vmem>>, vector<8x128xf32>
    %c0_i32_4 = arith.constant 0 : i32
    %5 = arith.index_cast %c0_i32_4 : i32 to index
    %c0_5 = arith.constant 0 : index
    %c0_6 = arith.constant 0 : index
    %6 = vector.load %arg2[%5, %c0_5, %c0_6] : memref<8x8x128xbf16, #tpu.memory_space<vmem>>, vector<1x8x128xbf16>
    %7 = vector.shape_cast %6 : vector<1x8x128xbf16> to vector<8x128xbf16>
    %8 = arith.extf %7 : vector<8x128xbf16> to vector<8x128xf32>
    %9 = arith.truncf %3 : vector<8x128xf32> to vector<8x128xbf16>
    %c0_7 = arith.constant 0 : index
    %c0_8 = arith.constant 0 : index
    %10 = vector.load %arg4[%c0_7, %c0_8] : memref<128x128xbf16, #tpu.memory_space<vmem>>, vector<128x128xbf16>
    %cst = arith.constant dense<0.000000e+00> : vector<8x128xf32>
    %11 = tpu.matmul %9, %10, %cst {dimension_numbers = #tpu.dot_dimension_numbers<[1], [0], [0], [1], [0, 0, 1, 1], [], []>} : vector<8x128xbf16>, vector<128x128xbf16>, vector<8x128xf32> -> vector<8x128xf32>
    %12 = arith.addf %8, %11 : vector<8x128xf32>
    %13 = math.tanh %12 : vector<8x128xf32>
    %14 = arith.addf %4, %13 : vector<8x128xf32>
    %c1_i32 = arith.constant 1 : i32
    %15 = arith.index_cast %c1_i32 : i32 to index
    %c0_9 = arith.constant 0 : index
    %c0_10 = arith.constant 0 : index
    %16 = vector.load %arg2[%15, %c0_9, %c0_10] : memref<8x8x128xbf16, #tpu.memory_space<vmem>>, vector<1x8x128xbf16>
    %17 = vector.shape_cast %16 : vector<1x8x128xbf16> to vector<8x128xbf16>
    %18 = arith.extf %17 : vector<8x128xbf16> to vector<8x128xf32>
    %19 = arith.truncf %13 : vector<8x128xf32> to vector<8x128xbf16>
    %c0_11 = arith.constant 0 : index
    %c0_12 = arith.constant 0 : index
    %20 = vector.load %arg4[%c0_11, %c0_12] : memref<128x128xbf16, #tpu.memory_space<vmem>>, vector<128x128xbf16>
    %cst_13 = arith.constant dense<0.000000e+00> : vector<8x128xf32>
    %21 = tpu.matmul %19, %20, %cst_13 {dimension_numbers = #tpu.dot_dimension_numbers<[1], [0], [0], [1], [0, 0, 1, 1], [], []>} : vector<8x128xbf16>, vector<128x128xbf16>, vector<8x128xf32> -> vector<8x128xf32>
    %22 = arith.addf %18, %21 : vector<8x128xf32>
    %23 = math.tanh %22 : vector<8x128xf32>
    %24 = arith.addf %14, %23 : vector<8x128xf32>
    %c2_i32 = arith.constant 2 : i32
    %25 = arith.index_cast %c2_i32 : i32 to index
    %c0_14 = arith.constant 0 : index
    %c0_15 = arith.constant 0 : index
    %26 = vector.load %arg2[%25, %c0_14, %c0_15] : memref<8x8x128xbf16, #tpu.memory_space<vmem>>, vector<1x8x128xbf16>
    %27 = vector.shape_cast %26 : vector<1x8x128xbf16> to vector<8x128xbf16>
    %28 = arith.extf %27 : vector<8x128xbf16> to vector<8x128xf32>
    %29 = arith.truncf %23 : vector<8x128xf32> to vector<8x128xbf16>
    %c0_16 = arith.constant 0 : index
    %c0_17 = arith.constant 0 : index
    %30 = vector.load %arg4[%c0_16, %c0_17] : memref<128x128xbf16, #tpu.memory_space<vmem>>, vector<128x128xbf16>
    %cst_18 = arith.constant dense<0.000000e+00> : vector<8x128xf32>
    %31 = tpu.matmul %29, %30, %cst_18 {dimension_numbers = #tpu.dot_dimension_numbers<[1], [0], [0], [1], [0, 0, 1, 1], [], []>} : vector<8x128xbf16>, vector<128x128xbf16>, vector<8x128xf32> -> vector<8x128xf32>
    %32 = arith.addf %28, %31 : vector<8x128xf32>
    %33 = math.tanh %32 : vector<8x128xf32>
    %34 = arith.addf %24, %33 : vector<8x128xf32>
    %c3_i32 = arith.constant 3 : i32
    %35 = arith.index_cast %c3_i32 : i32 to index
    %c0_19 = arith.constant 0 : index
    %c0_20 = arith.constant 0 : index
    %36 = vector.load %arg2[%35, %c0_19, %c0_20] : memref<8x8x128xbf16, #tpu.memory_space<vmem>>, vector<1x8x128xbf16>
    %37 = vector.shape_cast %36 : vector<1x8x128xbf16> to vector<8x128xbf16>
    %38 = arith.extf %37 : vector<8x128xbf16> to vector<8x128xf32>
    %39 = arith.truncf %33 : vector<8x128xf32> to vector<8x128xbf16>
    %c0_21 = arith.constant 0 : index
    %c0_22 = arith.constant 0 : index
    %40 = vector.load %arg4[%c0_21, %c0_22] : memref<128x128xbf16, #tpu.memory_space<vmem>>, vector<128x128xbf16>
    %cst_23 = arith.constant dense<0.000000e+00> : vector<8x128xf32>
    %41 = tpu.matmul %39, %40, %cst_23 {dimension_numbers = #tpu.dot_dimension_numbers<[1], [0], [0], [1], [0, 0, 1, 1], [], []>} : vector<8x128xbf16>, vector<128x128xbf16>, vector<8x128xf32> -> vector<8x128xf32>
    %42 = arith.addf %38, %41 : vector<8x128xf32>
    %43 = math.tanh %42 : vector<8x128xf32>
    %44 = arith.addf %34, %43 : vector<8x128xf32>
    %c4_i32 = arith.constant 4 : i32
    %45 = arith.index_cast %c4_i32 : i32 to index
    %c0_24 = arith.constant 0 : index
    %c0_25 = arith.constant 0 : index
    %46 = vector.load %arg2[%45, %c0_24, %c0_25] : memref<8x8x128xbf16, #tpu.memory_space<vmem>>, vector<1x8x128xbf16>
    %47 = vector.shape_cast %46 : vector<1x8x128xbf16> to vector<8x128xbf16>
    %48 = arith.extf %47 : vector<8x128xbf16> to vector<8x128xf32>
    %49 = arith.truncf %43 : vector<8x128xf32> to vector<8x128xbf16>
    %c0_26 = arith.constant 0 : index
    %c0_27 = arith.constant 0 : index
    %50 = vector.load %arg4[%c0_26, %c0_27] : memref<128x128xbf16, #tpu.memory_space<vmem>>, vector<128x128xbf16>
    %cst_28 = arith.constant dense<0.000000e+00> : vector<8x128xf32>
    %51 = tpu.matmul %49, %50, %cst_28 {dimension_numbers = #tpu.dot_dimension_numbers<[1], [0], [0], [1], [0, 0, 1, 1], [], []>} : vector<8x128xbf16>, vector<128x128xbf16>, vector<8x128xf32> -> vector<8x128xf32>
    %52 = arith.addf %48, %51 : vector<8x128xf32>
    %53 = math.tanh %52 : vector<8x128xf32>
    %54 = arith.addf %44, %53 : vector<8x128xf32>
    %c5_i32 = arith.constant 5 : i32
    %55 = arith.index_cast %c5_i32 : i32 to index
    %c0_29 = arith.constant 0 : index
    %c0_30 = arith.constant 0 : index
    %56 = vector.load %arg2[%55, %c0_29, %c0_30] : memref<8x8x128xbf16, #tpu.memory_space<vmem>>, vector<1x8x128xbf16>
    %57 = vector.shape_cast %56 : vector<1x8x128xbf16> to vector<8x128xbf16>
    %58 = arith.extf %57 : vector<8x128xbf16> to vector<8x128xf32>
    %59 = arith.truncf %53 : vector<8x128xf32> to vector<8x128xbf16>
    %c0_31 = arith.constant 0 : index
    %c0_32 = arith.constant 0 : index
    %60 = vector.load %arg4[%c0_31, %c0_32] : memref<128x128xbf16, #tpu.memory_space<vmem>>, vector<128x128xbf16>
    %cst_33 = arith.constant dense<0.000000e+00> : vector<8x128xf32>
    %61 = tpu.matmul %59, %60, %cst_33 {dimension_numbers = #tpu.dot_dimension_numbers<[1], [0], [0], [1], [0, 0, 1, 1], [], []>} : vector<8x128xbf16>, vector<128x128xbf16>, vector<8x128xf32> -> vector<8x128xf32>
    %62 = arith.addf %58, %61 : vector<8x128xf32>
    %63 = math.tanh %62 : vector<8x128xf32>
    %64 = arith.addf %54, %63 : vector<8x128xf32>
    %c6_i32 = arith.constant 6 : i32
    %65 = arith.index_cast %c6_i32 : i32 to index
    %c0_34 = arith.constant 0 : index
    %c0_35 = arith.constant 0 : index
    %66 = vector.load %arg2[%65, %c0_34, %c0_35] : memref<8x8x128xbf16, #tpu.memory_space<vmem>>, vector<1x8x128xbf16>
    %67 = vector.shape_cast %66 : vector<1x8x128xbf16> to vector<8x128xbf16>
    %68 = arith.extf %67 : vector<8x128xbf16> to vector<8x128xf32>
    %69 = arith.truncf %63 : vector<8x128xf32> to vector<8x128xbf16>
    %c0_36 = arith.constant 0 : index
    %c0_37 = arith.constant 0 : index
    %70 = vector.load %arg4[%c0_36, %c0_37] : memref<128x128xbf16, #tpu.memory_space<vmem>>, vector<128x128xbf16>
    %cst_38 = arith.constant dense<0.000000e+00> : vector<8x128xf32>
    %71 = tpu.matmul %69, %70, %cst_38 {dimension_numbers = #tpu.dot_dimension_numbers<[1], [0], [0], [1], [0, 0, 1, 1], [], []>} : vector<8x128xbf16>, vector<128x128xbf16>, vector<8x128xf32> -> vector<8x128xf32>
    %72 = arith.addf %68, %71 : vector<8x128xf32>
    %73 = math.tanh %72 : vector<8x128xf32>
    %74 = arith.addf %64, %73 : vector<8x128xf32>
    %c7_i32 = arith.constant 7 : i32
    %75 = arith.index_cast %c7_i32 : i32 to index
    %c0_39 = arith.constant 0 : index
    %c0_40 = arith.constant 0 : index
    %76 = vector.load %arg2[%75, %c0_39, %c0_40] : memref<8x8x128xbf16, #tpu.memory_space<vmem>>, vector<1x8x128xbf16>
    %77 = vector.shape_cast %76 : vector<1x8x128xbf16> to vector<8x128xbf16>
    %78 = arith.extf %77 : vector<8x128xbf16> to vector<8x128xf32>
    %79 = arith.truncf %73 : vector<8x128xf32> to vector<8x128xbf16>
    %c0_41 = arith.constant 0 : index
    %c0_42 = arith.constant 0 : index
    %80 = vector.load %arg4[%c0_41, %c0_42] : memref<128x128xbf16, #tpu.memory_space<vmem>>, vector<128x128xbf16>
    %cst_43 = arith.constant dense<0.000000e+00> : vector<8x128xf32>
    %81 = tpu.matmul %79, %80, %cst_43 {dimension_numbers = #tpu.dot_dimension_numbers<[1], [0], [0], [1], [0, 0, 1, 1], [], []>} : vector<8x128xbf16>, vector<128x128xbf16>, vector<8x128xf32> -> vector<8x128xf32>
    %82 = arith.addf %78, %81 : vector<8x128xf32>
    %83 = math.tanh %82 : vector<8x128xf32>
    %84 = arith.addf %74, %83 : vector<8x128xf32>
    %c8_i32 = arith.constant 8 : i32
    %c0_44 = arith.constant 0 : index
    %c0_45 = arith.constant 0 : index
    %85 = vector.load %arg9[%c0_44, %c0_45] : memref<8x128xf32, #tpu.memory_space<vmem>>, vector<8x128xf32>
    tpu.vector_store %arg9[%c0_44, %c0_45], %83 {strides = array<i32>} : memref<8x128xf32, #tpu.memory_space<vmem>>, vector<8x128xf32>,
    %c0_46 = arith.constant 0 : index
    %c0_47 = arith.constant 0 : index
    %86 = vector.load %arg10[%c0_46, %c0_47] : memref<8x128xf32, #tpu.memory_space<vmem>>, vector<8x128xf32>
    tpu.vector_store %arg10[%c0_46, %c0_47], %84 {strides = array<i32>} : memref<8x128xf32, #tpu.memory_space<vmem>>, vector<8x128xf32>,
    %c0_i32_48 = arith.constant 0 : i32
    %87 = arith.cmpi eq, %arg1, %c0_i32_48 : i32
    %88 = arith.extui %87 : i1 to i32
    %c0_i32_49 = arith.constant 0 : i32
    %89 = arith.cmpi ne, %88, %c0_i32_49 : i32
    scf.if %89 {
      %cst_50 = arith.constant 1.250000e-01 : f32
      %90 = vector.broadcast %cst_50 : f32 to vector<8x128xf32>
      %91 = arith.mulf %84, %90 : vector<8x128xf32>
      %92 = arith.truncf %91 : vector<8x128xf32> to vector<8x128xbf16>
      %c0_51 = arith.constant 0 : index
      %c0_52 = arith.constant 0 : index
      %93 = vector.load %arg5[%c0_51, %c0_52] : memref<128x128xbf16, #tpu.memory_space<vmem>>, vector<128x128xbf16>
      %cst_53 = arith.constant dense<0.000000e+00> : vector<8x128xf32>
      %94 = tpu.matmul %92, %93, %cst_53 {dimension_numbers = #tpu.dot_dimension_numbers<[1], [0], [0], [1], [0, 0, 1, 1], [], []>} : vector<8x128xbf16>, vector<128x128xbf16>, vector<8x128xf32> -> vector<8x128xf32>
      %c0_54 = arith.constant 0 : index
      %c0_55 = arith.constant 0 : index
      %95 = vector.load %arg6[%c0_54, %c0_55] : memref<1x128xf32, #tpu.memory_space<vmem>>, vector<1x128xf32>
      %96 = vector.broadcast %95 : vector<1x128xf32> to vector<8x128xf32>
      %97 = arith.addf %94, %96 : vector<8x128xf32>
      %c0_56 = arith.constant 0 : index
      %c0_57 = arith.constant 0 : index
      %98 = vector.load %arg7[%c0_56, %c0_57] : memref<8x128xf32, #tpu.memory_space<vmem>>, vector<8x128xf32>
      tpu.vector_store %arg7[%c0_56, %c0_57], %97 {strides = array<i32>} : memref<8x128xf32, #tpu.memory_space<vmem>>, vector<8x128xf32>,
      %c0_58 = arith.constant 0 : index
      %c0_59 = arith.constant 0 : index
      %99 = vector.load %arg8[%c0_58, %c0_59] : memref<8x128xf32, #tpu.memory_space<vmem>>, vector<8x128xf32>
      tpu.vector_store %arg8[%c0_58, %c0_59], %83 {strides = array<i32>} : memref<8x128xf32, #tpu.memory_space<vmem>>, vector<8x128xf32>,
    } else {
    }
    return
  }
  func.func @transform_0(%arg0: i32, %arg1: i32) -> (i32, i32, i32) {
    %c0_i32 = arith.constant 0 : i32
    %c0_i32_0 = arith.constant 0 : i32
    return %arg1, %arg0, %c0_i32 : i32, i32, i32
  }
  func.func @transform_1(%arg0: i32, %arg1: i32) -> (i32, i32) {
    %c0_i32 = arith.constant 0 : i32
    %c0_i32_0 = arith.constant 0 : i32
    return %arg0, %c0_i32 : i32, i32
  }
  func.func @transform_2(%arg0: i32, %arg1: i32) -> (i32, i32) {
    %c0_i32 = arith.constant 0 : i32
    %c0_i32_0 = arith.constant 0 : i32
    %c0_i32_1 = arith.constant 0 : i32
    return %c0_i32, %c0_i32_0 : i32, i32
  }
  func.func @transform_3(%arg0: i32, %arg1: i32) -> (i32, i32) {
    %c0_i32 = arith.constant 0 : i32
    %c0_i32_0 = arith.constant 0 : i32
    %c0_i32_1 = arith.constant 0 : i32
    return %c0_i32, %c0_i32_0 : i32, i32
  }
  func.func @transform_4(%arg0: i32, %arg1: i32) -> (i32, i32) {
    %c0_i32 = arith.constant 0 : i32
    %c0_i32_0 = arith.constant 0 : i32
    %c0_i32_1 = arith.constant 0 : i32
    return %c0_i32, %c0_i32_0 : i32, i32
  }
  func.func @transform_5(%arg0: i32, %arg1: i32) -> (i32, i32) {
    %c0_i32 = arith.constant 0 : i32
    %c0_i32_0 = arith.constant 0 : i32
    return %arg0, %c0_i32 : i32, i32
  }
  func.func @transform_6(%arg0: i32, %arg1: i32) -> (i32, i32) {
    %c0_i32 = arith.constant 0 : i32
    %c0_i32_0 = arith.constant 0 : i32
    return %arg0, %c0_i32 : i32, i32
  }
}

</mosaic_0001>

<llo_original>
// kernel: tpu_custom_call.1
$region0: #{tpu_custom_call.1}
  #allocation0 [shape = 'u32[]', space=smem, size = 0x4, offset = 0x4, fixed_abs, tag = 'smem constant byte address 0x4 - core index']
  #allocation1 [shape = 'u32[72,128]{1,0:T(1,128)}', space=vmem, size = 0x9000, scoped, tag = 'internal scratch']
  #allocation2 [shape = 'f32[8,128]{1,0:T(8,128)}', space=vmem, size = 0x1000, scoped, tag = 'scratch operand']
  #allocation3 [shape = 'f32[8,128]{1,0:T(8,128)}', space=vmem, size = 0x1000, scoped, tag = 'scratch operand']
  %s0 = inlined_call_operand.hbm [shape: bf16[8,8,128], index: 0, kind: input, shape index: {}]
  %s1 = inlined_call_operand.hbm [shape: f32[8,128], index: 1, kind: input, shape index: {}]
  %s2 = inlined_call_operand.hbm [shape: bf16[128,128], index: 2, kind: input, shape index: {}]
  %s3 = inlined_call_operand.hbm [shape: bf16[128,128], index: 3, kind: input, shape index: {}]
  %s4 = inlined_call_operand.vmem [shape: f32[1,128], index: 4, kind: input, shape index: {}]
  %s5 = inlined_call_operand.hbm [shape: f32[8,128], index: 5, kind: output, shape index: {0}]
  %s6 = inlined_call_operand.hbm [shape: f32[8,128], index: 6, kind: output, shape index: {1}]
  %7 = xla_tuple %s5, %s6
  %s8 = sld [smem:[#allocation0]]
  $region62: #{tpu_custom_call.1} parent=0
    _
  %s10 = ssub.s32 1, %s8
  %s11 = scalar_select 0, %s10, %s8
  $region1: #{tpu_custom_call.1} parent=0
    #allocation4 [shape = 'u8[16384]{0}', space=vmem, size = 0x4000, scoped, tag = 'input window, operand 0, single buffered']
    #allocation5 [shape = 's32[1]{0}', space=sflag, size = 0x4, scoped, tag = 'scoped memory for tpu_custom_call.1']
    #allocation6 [shape = 's32[1]{0}', space=sflag, size = 0x4, scoped, tag = 'scoped memory for tpu_custom_call.1']
    #allocation7 [shape = 'u8[4096]{0}', space=vmem, size = 0x1000, scoped, tag = 'input window, operand 1, single buffered']
    #allocation8 [shape = 's32[1]{0}', space=sflag, size = 0x4, scoped, tag = 'scoped memory for tpu_custom_call.1']
    #allocation9 [shape = 'u8[32768]{0}', space=vmem, size = 0x8000, scoped, tag = 'input window, operand 2, single buffered']
    #allocation10 [shape = 'u8[32768]{0}', space=vmem, size = 0x8000, scoped, tag = 'input window, operand 3, single buffered']
    #allocation11 [shape = 's32[1]{0}', space=sflag, size = 0x4, scoped, tag = 'scoped memory for tpu_custom_call.1']
    #allocation12 [shape = 'u8[4096]{0}', space=vmem, size = 0x1000, scoped, tag = 'output window, operand 0, single buffered']
    #allocation13 [shape = 'u8[4096]{0}', space=vmem, size = 0x1000, scoped, tag = 'output window, operand 1, single buffered']
    #allocation14 [shape = 's32[1]{0}', space=sflag, size = 0x4, scoped, tag = 'scoped memory for tpu_custom_call.1']
    %12 = vsyncpa [#allocation5], 0
    %13 = vsyncpa [#allocation8], 0
    %14 = vsyncpa [#allocation11], 0
    %15 = vsyncpa [#allocation6], 0
    %16 = vsyncpa [#allocation14], 0
    // Predicated region
    $region2: #{tpu_custom_call.1} parent=1 // pred_check
      _
    $region3: #{tpu_custom_call.1} parent=1 // pred_check_branch
      %18 = sbr.rel (0) target = $region5
    $region4: #{tpu_custom_call.1} parent=1 // pred_region
      %20 = vsyncadd [#allocation5], 0
      %s21 = sshll.u32 %s0, 4
      %s22 = int_to_ptr.hbm [resolvable:$true] %s21
      %s23 = sshll.u32 [#allocation4], 4
      %s24 = int_to_ptr.vmem [resolvable:$true] %s23
      %29 = dma.hbm_to_vmem [thread:$0]  %s22, 512, %s24, [#allocation5], 64, 64, 4
    $region5: #{tpu_custom_call.1} parent=1 // pred_fallthru
      _
    // Predicated region
    $region6: #{tpu_custom_call.1} parent=1 // pred_check
      _
    $region7: #{tpu_custom_call.1} parent=1 // pred_check_branch
      %31 = sbr.rel (0) target = $region9
    $region8: #{tpu_custom_call.1} parent=1 // pred_region
      %33 = vsyncadd [#allocation8], 0
      %s35 = sshll.u32 %s1, 4
      %s36 = int_to_ptr.hbm [resolvable:$true] %s35
      %s37 = sshll.u32 [#allocation7], 4
      %s38 = int_to_ptr.vmem [resolvable:$true] %s37
      %40 = dma.hbm_to_vmem [thread:$0]  %s36, 128, %s38, [#allocation8]
    $region9: #{tpu_custom_call.1} parent=1 // pred_fallthru
      _
    // Predicated region
    $region10: #{tpu_custom_call.1} parent=1 // pred_check
      _
    $region11: #{tpu_custom_call.1} parent=1 // pred_check_branch
      %42 = sbr.rel (0) target = $region13
    $region12: #{tpu_custom_call.1} parent=1 // pred_region
      %44 = vsyncadd [#allocation8], 0
      %s45 = sshll.u32 %s2, 4
      %s46 = int_to_ptr.hbm [resolvable:$true] %s45
      %s47 = sshll.u32 [#allocation9], 4
      %s48 = int_to_ptr.vmem [resolvable:$true] %s47
      %53 = dma.hbm_to_vmem [thread:$0]  %s46, 1024, %s48, [#allocation8], 64, 64, 4
    $region13: #{tpu_custom_call.1} parent=1 // pred_fallthru
      _
    // Predicated region
    $region14: #{tpu_custom_call.1} parent=1 // pred_check
      _
    $region15: #{tpu_custom_call.1} parent=1 // pred_check_branch
      %55 = sbr.rel (0) target = $region17
    $region16: #{tpu_custom_call.1} parent=1 // pred_region
      %57 = vsyncadd [#allocation11], 0
      %s58 = sshll.u32 %s3, 4
      %s59 = int_to_ptr.hbm [resolvable:$true] %s58
      %s60 = sshll.u32 [#allocation10], 4
      %s61 = int_to_ptr.vmem [resolvable:$true] %s60
      %66 = dma.hbm_to_vmem [thread:$0]  %s59, 1024, %s61, [#allocation11], 64, 64, 4
    $region17: #{tpu_custom_call.1} parent=1 // pred_fallthru
      _
    // Predicated region
    $region18: #{tpu_custom_call.1} parent=1 // pred_check
      _
    $region19: #{tpu_custom_call.1} parent=1 // pred_check_branch
      %68 = sbr.rel (0) target = $region21
    $region20: #{tpu_custom_call.1} parent=1 // pred_region
      _
    $region21: #{tpu_custom_call.1} parent=1 // pred_fallthru
      _
    // Predicated region
    $region22: #{tpu_custom_call.1} parent=1 // pred_check
      _
    $region23: #{tpu_custom_call.1} parent=1 // pred_check_branch
      %70 = sbr.rel (0) target = $region25
    $region24: #{tpu_custom_call.1} parent=1 // pred_region
      %72 = dma.done [#allocation5], 512
    $region25: #{tpu_custom_call.1} parent=1 // pred_fallthru
      _
    // Predicated region
    $region26: #{tpu_custom_call.1} parent=1 // pred_check
      _
    $region27: #{tpu_custom_call.1} parent=1 // pred_check_branch
      %74 = sbr.rel (0) target = $region29
    $region28: #{tpu_custom_call.1} parent=1 // pred_region
      %76 = dma.done [#allocation8], 128
    $region29: #{tpu_custom_call.1} parent=1 // pred_fallthru
      _
    // Predicated region
    $region30: #{tpu_custom_call.1} parent=1 // pred_check
      _
    $region31: #{tpu_custom_call.1} parent=1 // pred_check_branch
      %78 = sbr.rel (0) target = $region33
    $region32: #{tpu_custom_call.1} parent=1 // pred_region
      %80 = dma.done [#allocation8], 1024
    $region33: #{tpu_custom_call.1} parent=1 // pred_fallthru
      _
    // Predicated region
    $region34: #{tpu_custom_call.1} parent=1 // pred_check
      _
    $region35: #{tpu_custom_call.1} parent=1 // pred_check_branch
      %82 = sbr.rel (0) target = $region37
    $region36: #{tpu_custom_call.1} parent=1 // pred_region
      %84 = dma.done [#allocation11], 1024
    $region37: #{tpu_custom_call.1} parent=1 // pred_fallthru
      _
    %p85 = scmp.eq.s32.totalorder 0, 0
    // Predicated region
    $region38: #{tpu_custom_call.1} parent=1 // pred_check
      %p86 = pneg %p85
    $region39: #{tpu_custom_call.1} parent=1 // pred_check_branch
      %88 = sbr.rel (%p86) target = $region41
    $region40: #{tpu_custom_call.1} parent=1 // pred_region
      %v89 = vld [vmem:[#allocation7] sm:$0xff]
      %90 = vst [vmem:[#allocation2] sm:$0xff] %v89
      %91 = vst [vmem:[#allocation3] sm:$0xff] 0.0
    $region41: #{tpu_custom_call.1} parent=1 // pred_fallthru
      _
    %v92 = vld [vmem:[#allocation2] sm:$0xff]
    %v93 = vld [vmem:[#allocation3] sm:$0xff]
    %v94 = vld [vmem:[#allocation4] sm:$0xf]
    %v95 = vunpack.c.l.bf16 %v94
    %v96 = vpack.c.bf16 %v92, %v92
    %v97 = vld [vmem:[#allocation9] sm:$0xf]
    %v98 = vld [vmem:[#allocation9 + $0x4] sm:$0xf]
    %v99 = vld [vmem:[#allocation9 + $0x8] sm:$0xf]
    %v100 = vld [vmem:[#allocation9 + $0xc] sm:$0xf]
    %v101 = vld [vmem:[#allocation9 + $0x10] sm:$0xf]
    %v102 = vld [vmem:[#allocation9 + $0x14] sm:$0xf]
    %v103 = vld [vmem:[#allocation9 + $0x18] sm:$0xf]
    %v104 = vld [vmem:[#allocation9 + $0x1c] sm:$0xf]
    %v105 = vld [vmem:[#allocation9 + $0x20] sm:$0xf]
    %v106 = vld [vmem:[#allocation9 + $0x24] sm:$0xf]
    %v107 = vld [vmem:[#allocation9 + $0x28] sm:$0xf]
    %v108 = vld [vmem:[#allocation9 + $0x2c] sm:$0xf]
    %v109 = vld [vmem:[#allocation9 + $0x30] sm:$0xf]
    %v110 = vld [vmem:[#allocation9 + $0x34] sm:$0xf]
    %v111 = vld [vmem:[#allocation9 + $0x38] sm:$0xf]
    %v112 = vld [vmem:[#allocation9 + $0x3c] sm:$0xf]
    %v129 = vunpack.c.l.b16 %v97
    %v130 = vunpack.c.l.b16 %v98
    %v131 = vunpack.c.l.b16 %v99
    %v132 = vunpack.c.l.b16 %v100
    %v133 = vunpack.c.l.b16 %v101
    %v134 = vunpack.c.l.b16 %v102
    %v135 = vunpack.c.l.b16 %v103
    %v136 = vunpack.c.l.b16 %v104
    %v137 = vunpack.c.l.b16 %v105
    %v138 = vunpack.c.l.b16 %v106
    %v139 = vunpack.c.l.b16 %v107
    %v140 = vunpack.c.l.b16 %v108
    %v141 = vunpack.c.l.b16 %v109
    %v142 = vunpack.c.l.b16 %v110
    %v143 = vunpack.c.l.b16 %v111
    %v144 = vunpack.c.l.b16 %v112
    %v145 = vpack.c.b16 %v130, %v129
    %v146 = vpack.c.b16 %v132, %v131
    %v147 = vpack.c.b16 %v134, %v133
    %v148 = vpack.c.b16 %v136, %v135
    %v149 = vpack.c.b16 %v138, %v137
    %v150 = vpack.c.b16 %v140, %v139
    %v151 = vpack.c.b16 %v142, %v141
    %v152 = vpack.c.b16 %v144, %v143
    %161 = vmatpush.bf16.msra.mxu0 %v152
    %162 = vmatpush.bf16.msra.mxu0 %v151
    %163 = vmatpush.bf16.msra.mxu0 %v150
    %164 = vmatpush.bf16.msra.mxu0 %v149
    %165 = vmatpush.bf16.msra.mxu0 %v148
    %166 = vmatpush.bf16.msra.mxu0 %v147
    %167 = vmatpush.bf16.msra.mxu0 %v146
    %168 = vmatpush.bf16.msra.mxu0 %v145
    %169 = vmatmul.bf16.gmra.mxu0 %v96
    %v170 = vpop.f32.mrf.mxu0
    %v171 = vadd.f32 0.0, %v170
    %v172 = vpop.f32.mrf.mxu0
    %173 = vdwg.mxu0
    %v174 = vadd.f32 %v95, %v171
    %v175 = vtanh.pop %v174
    %v176 = vadd.f32 %v93, %v175
    %s177 = scalar_lea.vmem [#allocation4], 4
    %v178 = vld [vmem:[%s177] sm:$0xf]
    %v179 = vunpack.c.l.bf16 %v178
    %v180 = vpack.c.bf16 %v175, %v175
    %181 = vmatpush.bf16.msra.mxu0 %v152
    %182 = vmatpush.bf16.msra.mxu0 %v151
    %183 = vmatpush.bf16.msra.mxu0 %v150
    %184 = vmatpush.bf16.msra.mxu0 %v149
    %185 = vmatpush.bf16.msra.mxu0 %v148
    %186 = vmatpush.bf16.msra.mxu0 %v147
    %187 = vmatpush.bf16.msra.mxu0 %v146
    %188 = vmatpush.bf16.msra.mxu0 %v145
    %189 = vmatmul.bf16.gmra.mxu0 %v180
    %v190 = vpop.f32.mrf.mxu0
    %v191 = vadd.f32 0.0, %v190
    %v192 = vpop.f32.mrf.mxu0
    %193 = vdwg.mxu0
    %v194 = vadd.f32 %v179, %v191
    %v195 = vtanh.pop %v194
    %v196 = vadd.f32 %v176, %v195
    %s197 = scalar_lea.vmem [#allocation4], 8
    %v198 = vld [vmem:[%s197] sm:$0xf]
    %v199 = vunpack.c.l.bf16 %v198
    %v200 = vpack.c.bf16 %v195, %v195
    %201 = vmatpush.bf16.msra.mxu0 %v152
    %202 = vmatpush.bf16.msra.mxu0 %v151
    %203 = vmatpush.bf16.msra.mxu0 %v150
    %204 = vmatpush.bf16.msra.mxu0 %v149
    %205 = vmatpush.bf16.msra.mxu0 %v148
    %206 = vmatpush.bf16.msra.mxu0 %v147
    %207 = vmatpush.bf16.msra.mxu0 %v146
    %208 = vmatpush.bf16.msra.mxu0 %v145
    %209 = vmatmul.bf16.gmra.mxu0 %v200
    %v210 = vpop.f32.mrf.mxu0
    %v211 = vadd.f32 0.0, %v210
    %v212 = vpop.f32.mrf.mxu0
    %213 = vdwg.mxu0
    %v214 = vadd.f32 %v199, %v211
    %v215 = vtanh.pop %v214
    %v216 = vadd.f32 %v196, %v215
    %s217 = scalar_lea.vmem [#allocation4], 12
    %v218 = vld [vmem:[%s217] sm:$0xf]
    %v219 = vunpack.c.l.bf16 %v218
    %v220 = vpack.c.bf16 %v215, %v215
    %221 = vmatpush.bf16.msra.mxu0 %v152
    %222 = vmatpush.bf16.msra.mxu0 %v151
    %223 = vmatpush.bf16.msra.mxu0 %v150
    %224 = vmatpush.bf16.msra.mxu0 %v149
    %225 = vmatpush.bf16.msra.mxu0 %v148
    %226 = vmatpush.bf16.msra.mxu0 %v147
    %227 = vmatpush.bf16.msra.mxu0 %v146
    %228 = vmatpush.bf16.msra.mxu0 %v145
    %229 = vmatmul.bf16.gmra.mxu0 %v220
    %v230 = vpop.f32.mrf.mxu0
    %v231 = vadd.f32 0.0, %v230
    %v232 = vpop.f32.mrf.mxu0
    %233 = vdwg.mxu0
    %v234 = vadd.f32 %v219, %v231
    %v235 = vtanh.pop %v234
    %v236 = vadd.f32 %v216, %v235
    %s237 = scalar_lea.vmem [#allocation4], 16
    %v238 = vld [vmem:[%s237] sm:$0xf]
    %v239 = vunpack.c.l.bf16 %v238
    %v240 = vpack.c.bf16 %v235, %v235
    %241 = vmatpush.bf16.msra.mxu0 %v152
    %242 = vmatpush.bf16.msra.mxu0 %v151
    %243 = vmatpush.bf16.msra.mxu0 %v150
    %244 = vmatpush.bf16.msra.mxu0 %v149
    %245 = vmatpush.bf16.msra.mxu0 %v148
    %246 = vmatpush.bf16.msra.mxu0 %v147
    %247 = vmatpush.bf16.msra.mxu0 %v146
    %248 = vmatpush.bf16.msra.mxu0 %v145
    %249 = vmatmul.bf16.gmra.mxu0 %v240
    %v250 = vpop.f32.mrf.mxu0
    %v251 = vadd.f32 0.0, %v250
    %v252 = vpop.f32.mrf.mxu0
    %253 = vdwg.mxu0
    %v254 = vadd.f32 %v239, %v251
    %v255 = vtanh.pop %v254
    %v256 = vadd.f32 %v236, %v255
    %s257 = scalar_lea.vmem [#allocation4], 20
    %v258 = vld [vmem:[%s257] sm:$0xf]
    %v259 = vunpack.c.l.bf16 %v258
    %v260 = vpack.c.bf16 %v255, %v255
    %261 = vmatpush.bf16.msra.mxu0 %v152
    %262 = vmatpush.bf16.msra.mxu0 %v151
    %263 = vmatpush.bf16.msra.mxu0 %v150
    %264 = vmatpush.bf16.msra.mxu0 %v149
    %265 = vmatpush.bf16.msra.mxu0 %v148
    %266 = vmatpush.bf16.msra.mxu0 %v147
    %267 = vmatpush.bf16.msra.mxu0 %v146
    %268 = vmatpush.bf16.msra.mxu0 %v145
    %269 = vmatmul.bf16.gmra.mxu0 %v260
    %v270 = vpop.f32.mrf.mxu0
    %v271 = vadd.f32 0.0, %v270
    %v272 = vpop.f32.mrf.mxu0
    %273 = vdwg.mxu0
    %v274 = vadd.f32 %v259, %v271
    %v275 = vtanh.pop %v274
    %v276 = vadd.f32 %v256, %v275
    %s277 = scalar_lea.vmem [#allocation4], 24
    %v278 = vld [vmem:[%s277] sm:$0xf]
    %v279 = vunpack.c.l.bf16 %v278
    %v280 = vpack.c.bf16 %v275, %v275
    %281 = vmatpush.bf16.msra.mxu0 %v152
    %282 = vmatpush.bf16.msra.mxu0 %v151
    %283 = vmatpush.bf16.msra.mxu0 %v150
    %284 = vmatpush.bf16.msra.mxu0 %v149
    %285 = vmatpush.bf16.msra.mxu0 %v148
    %286 = vmatpush.bf16.msra.mxu0 %v147
    %287 = vmatpush.bf16.msra.mxu0 %v146
    %288 = vmatpush.bf16.msra.mxu0 %v145
    %289 = vmatmul.bf16.gmra.mxu0 %v280
    %v290 = vpop.f32.mrf.mxu0
    %v291 = vadd.f32 0.0, %v290
    %v292 = vpop.f32.mrf.mxu0
    %293 = vdwg.mxu0
    %v294 = vadd.f32 %v279, %v291
    %v295 = vtanh.pop %v294
    %v296 = vadd.f32 %v276, %v295
    %s297 = scalar_lea.vmem [#allocation4], 28
    %v298 = vld [vmem:[%s297] sm:$0xf]
    %v299 = vunpack.c.l.bf16 %v298
    %v300 = vpack.c.bf16 %v295, %v295
    %301 = vmatpush.bf16.msra.mxu0 %v152
    %302 = vmatpush.bf16.msra.mxu0 %v151
    %303 = vmatpush.bf16.msra.mxu0 %v150
    %304 = vmatpush.bf16.msra.mxu0 %v149
    %305 = vmatpush.bf16.msra.mxu0 %v148
    %306 = vmatpush.bf16.msra.mxu0 %v147
    %307 = vmatpush.bf16.msra.mxu0 %v146
    %308 = vmatpush.bf16.msra.mxu0 %v145
    %309 = vmatmul.bf16.gmra.mxu0 %v300
    %v310 = vpop.f32.mrf.mxu0
    %v311 = vadd.f32 0.0, %v310
    %v312 = vpop.f32.mrf.mxu0
    %313 = vdwg.mxu0
    %v314 = vadd.f32 %v299, %v311
    %v315 = vtanh.pop %v314
    %v316 = vadd.f32 %v296, %v315
    %317 = vst [vmem:[#allocation2] sm:$0xff] %v315
    %318 = vst [vmem:[#allocation3] sm:$0xff] %v316
    // Predicated region
    $region42: #{tpu_custom_call.1} parent=1 // pred_check
      %p319 = pneg %p85
    $region43: #{tpu_custom_call.1} parent=1 // pred_check_branch
      %321 = sbr.rel (%p319) target = $region45
    $region44: #{tpu_custom_call.1} parent=1 // pred_region
      %v322 = vmul.f32 %v316, 0.125
      %v323 = vpack.c.bf16 %v322, %v322
      %v324 = vld [vmem:[#allocation10] sm:$0xf]
      %v325 = vld [vmem:[#allocation10 + $0x4] sm:$0xf]
      %v326 = vld [vmem:[#allocation10 + $0x8] sm:$0xf]
      %v327 = vld [vmem:[#allocation10 + $0xc] sm:$0xf]
      %v328 = vld [vmem:[#allocation10 + $0x10] sm:$0xf]
      %v329 = vld [vmem:[#allocation10 + $0x14] sm:$0xf]
      %v330 = vld [vmem:[#allocation10 + $0x18] sm:$0xf]
      %v331 = vld [vmem:[#allocation10 + $0x1c] sm:$0xf]
      %v332 = vld [vmem:[#allocation10 + $0x20] sm:$0xf]
      %v333 = vld [vmem:[#allocation10 + $0x24] sm:$0xf]
      %v334 = vld [vmem:[#allocation10 + $0x28] sm:$0xf]
      %v335 = vld [vmem:[#allocation10 + $0x2c] sm:$0xf]
      %v336 = vld [vmem:[#allocation10 + $0x30] sm:$0xf]
      %v337 = vld [vmem:[#allocation10 + $0x34] sm:$0xf]
      %v338 = vld [vmem:[#allocation10 + $0x38] sm:$0xf]
      %v339 = vld [vmem:[#allocation10 + $0x3c] sm:$0xf]
      %v340 = vld [vmem:[%s4] sm:$0x1]
      %v342 = vperm.slane %v340, 0
      %v360 = vunpack.c.l.b16 %v324
      %v361 = vunpack.c.l.b16 %v325
      %v362 = vunpack.c.l.b16 %v326
      %v363 = vunpack.c.l.b16 %v327
      %v364 = vunpack.c.l.b16 %v328
      %v365 = vunpack.c.l.b16 %v329
      %v366 = vunpack.c.l.b16 %v330
      %v367 = vunpack.c.l.b16 %v331
      %v368 = vunpack.c.l.b16 %v332
      %v369 = vunpack.c.l.b16 %v333
      %v370 = vunpack.c.l.b16 %v334
      %v371 = vunpack.c.l.b16 %v335
      %v372 = vunpack.c.l.b16 %v336
      %v373 = vunpack.c.l.b16 %v337
      %v374 = vunpack.c.l.b16 %v338
      %v375 = vunpack.c.l.b16 %v339
      %v376 = vpack.c.b16 %v361, %v360
      %v377 = vpack.c.b16 %v363, %v362
      %v378 = vpack.c.b16 %v365, %v364
      %v379 = vpack.c.b16 %v367, %v366
      %v380 = vpack.c.b16 %v369, %v368
      %v381 = vpack.c.b16 %v371, %v370
      %v382 = vpack.c.b16 %v373, %v372
      %v383 = vpack.c.b16 %v375, %v374
      %392 = vmatpush.bf16.msra.mxu0 %v383
      %393 = vmatpush.bf16.msra.mxu0 %v382
      %394 = vmatpush.bf16.msra.mxu0 %v381
      %395 = vmatpush.bf16.msra.mxu0 %v380
      %396 = vmatpush.bf16.msra.mxu0 %v379
      %397 = vmatpush.bf16.msra.mxu0 %v378
      %398 = vmatpush.bf16.msra.mxu0 %v377
      %399 = vmatpush.bf16.msra.mxu0 %v376
      %400 = vmatmul.bf16.gmra.mxu0 %v323
      %v401 = vpop.f32.mrf.mxu0
      %v402 = vadd.f32 %v342, %v401
      %v403 = vpop.f32.mrf.mxu0
      %404 = vdwg.mxu0
      %405 = vst [vmem:[#allocation12] sm:$0xff] %v402
      %406 = vst [vmem:[#allocation13] sm:$0xff] %v315
    $region45: #{tpu_custom_call.1} parent=1 // pred_fallthru
      _
    // Predicated region
    $region46: #{tpu_custom_call.1} parent=1 // pred_check
      _
    $region47: #{tpu_custom_call.1} parent=1 // pred_check_branch
      %408 = sbr.rel (0) target = $region49
    $region48: #{tpu_custom_call.1} parent=1 // pred_region
      %410 = vsyncadd [#allocation6], 0
      %s412 = sshll.u32 [#allocation12], 4
      %s413 = int_to_ptr.vmem [resolvable:$true] %s412
      %s414 = sshll.u32 %s5, 4
      %s415 = int_to_ptr.hbm [resolvable:$true] %s414
      %417 = dma.vmem_to_hbm [thread:$0]  %s413, 128, %s415, [#allocation6]
    $region49: #{tpu_custom_call.1} parent=1 // pred_fallthru
      _
    // Predicated region
    $region50: #{tpu_custom_call.1} parent=1 // pred_check
      _
    $region51: #{tpu_custom_call.1} parent=1 // pred_check_branch
      %419 = sbr.rel (0) target = $region53
    $region52: #{tpu_custom_call.1} parent=1 // pred_region
      %421 = vsyncadd [#allocation14], 0
      %s423 = sshll.u32 [#allocation13], 4
      %s424 = int_to_ptr.vmem [resolvable:$true] %s423
      %s425 = sshll.u32 %s6, 4
      %s426 = int_to_ptr.hbm [resolvable:$true] %s425
      %428 = dma.vmem_to_hbm [thread:$0]  %s424, 128, %s426, [#allocation14]
    $region53: #{tpu_custom_call.1} parent=1 // pred_fallthru
      _
    // Predicated region
    $region54: #{tpu_custom_call.1} parent=1 // pred_check
      _
    $region55: #{tpu_custom_call.1} parent=1 // pred_check_branch
      %430 = sbr.rel (0) target = $region57
    $region56: #{tpu_custom_call.1} parent=1 // pred_region
      %432 = dma.done [#allocation6], 128
    $region57: #{tpu_custom_call.1} parent=1 // pred_fallthru
      _
    // Predicated region
    $region58: #{tpu_custom_call.1} parent=1 // pred_check
      _
    $region59: #{tpu_custom_call.1} parent=1 // pred_check_branch
      %434 = sbr.rel (0) target = $region61
    $region60: #{tpu_custom_call.1} parent=1 // pred_region
      %436 = dma.done [#allocation14], 128
    $region61: #{tpu_custom_call.1} parent=1 // pred_fallthru
      _
    %437 = vsyncpa [#allocation5], 1
    %438 = vsyncpa [#allocation8], 1
    %439 = vsyncpa [#allocation11], 1
    %440 = vsyncpa [#allocation6], 1
    %441 = vsyncpa [#allocation14], 1

</llo_original>
